<compile_context>
chip_gen: v7x
topology: tpu7x:2x2x1
jax: 0.10.0
libtpu: 0.0.40
codegen_flags: <defaults>
</compile_context>

<pallas_src>
import functools

import jax
import jax.numpy as jnp
from jax import lax
from jax.experimental import pallas as pl
from jax.experimental.pallas import tpu as pltpu


def _round_up(x, m):
    return ((x + m - 1) // m) * m


_VMEM_BUDGET_BYTES = 20 * 1024 * 1024   # estimated working set; safe on v5e/v6e/v7x
_VMEM_LIMIT_BYTES = 48 * 1024 * 1024    # < v7x 64 MiB physical, << v5e/v6e 128 MiB
_MAX_TILE_N = 16 * 1024


def _focal_loss_kernel(logits_ref, targets_ref, loss_ref, *, gamma):
    # logits_ref:  (TILE_N, C) block, native dtype (f32 / bf16 DMA'd natively)
    # targets_ref: (1, TILE_N) int32, lane-dense
    # loss_ref:    (1, TILE_N) f32,   lane-dense
    x = logits_ref[...].astype(jnp.float32)                     # (TN, C)
    tn, c = x.shape

    # Keep the class axis a multiple of 8 sublanes before the transpose.
    # Padded classes get a very negative logit -> exp() == 0, never the target.
    c_pad = (-c) % 8
    if c_pad:
        x = jnp.concatenate(
            [x, jnp.full((tn, c_pad), -1e30, dtype=jnp.float32)], axis=1)

    # One XLU transpose so all per-element VPU/EUP work runs at full 128-lane
    # density even for small C, and per-row results are lane-dense (1, TN).
    xt = x.T                                                     # (C8, TN) f32
    tgt = targets_ref[...]                                       # (1, TN) int32

    # One-hot gather of the target logit (no dynamic gather on TPU).
    cls = lax.broadcasted_iota(jnp.int32, xt.shape, 0)           # class id / sublane
    target_logit = jnp.sum(jnp.where(cls == tgt, xt, 0.0),
                           axis=0, keepdims=True)                # (1, TN)

    # Numerically stable logsumexp over classes; never materialize full logp.
    m = jnp.max(xt, axis=0, keepdims=True)                       # (1, TN)
    # TODO(synk): on v6e/v7x this exp could run in bf16 on the EUP (~2x) at
    # ~1e-3 relative cost; kept in f32 so one code path also serves v5e.
    sumexp = jnp.sum(jnp.exp(xt - m), axis=0, keepdims=True)     # (1, TN)
    target_logp = target_logit - m - jnp.log(sumexp)             # (1, TN)

    target_p = jnp.exp(target_logp)
    one_minus_p = jnp.maximum(1.0 - target_p, 0.0)               # clamp fp drift
    if gamma == 0.0:
        weight = jnp.ones_like(one_minus_p)
    elif gamma == 1.0:
        weight = one_minus_p
    elif gamma == 2.0:
        weight = one_minus_p * one_minus_p
    else:
        # (1-p)**gamma via exp/log with a floored base: finite for p -> 1.
        weight = jnp.exp(jnp.float32(gamma) *
                         jnp.log(jnp.maximum(one_minus_p, 1e-37)))

    loss_ref[...] = -weight * target_logp


def _choose_tile_n(c, itemsize):
    """Batch tile from a lane-padded, f32-aware VMEM byte budget.

    Per batch row we count: 2 double-buffered native-dtype logits DMA blocks
    (lanes padded to 128), the in-kernel f32 upcast, the transposed f32 tile
    plus ~4 same-shaped temporaries (lane-dense, so only round_up(C, 8)
    sublanes wide), and the small 8-sublane-padded (1, TILE_N) vectors
    (targets/loss blocks, m, lse, weight, ...).  Total is kept well under
    v7x's 64 MiB physical VMEM; v5e/v6e (128 MiB) are automatically safe.
    """
    c_lane = _round_up(max(c, 1), 128)
    c_sub = _round_up(max(c, 1), 8)
    per_row = (2 * c_lane * itemsize      # pipelined logits blocks (native dtype)
               + c_lane * 4               # f32 upcast of the tile
               + 5 * c_sub * 4            # transposed tile + elementwise temps
               + 12 * 8 * 4)              # lane-dense (1, TILE_N) vectors
    tile = _VMEM_BUDGET_BYTES // per_row
    tile = max(128, min(_MAX_TILE_N, (tile // 128) * 128))
    return tile


def focal_loss(logits, targets, *, gamma=1.0, reduction=False, tile_n=None):
    """Pallas implementation of FocalLoss.forward.

    Args:
      logits:  (N, C) float array (f32 or bf16; bf16 is DMA'd natively).
      targets: (N,) integer class indices in [0, C) (matches the torch assert
               `targets > -1`; out-of-range indices are not checked).
      gamma:   focal exponent (compile-time constant).
      reduction: if True, return scalar mean; else per-sample losses (N,).
      tile_n:  optional batch tile override (rounded to a multiple of 128 when
               the batch spans several tiles).
    """
    assert logits.ndim == 2
    n, c = logits.shape
    targets_row = targets.astype(jnp.int32).reshape(1, n)        # lane-dense input

    if tile_n is None:
        tile_n = _choose_tile_n(c, jnp.dtype(logits.dtype).itemsize)
    tile_n = int(tile_n)
    if tile_n >= n:
        # A single tile would cover the whole batch.  For medium/large n keep
        # at least two grid steps so the "parallel" batch axis feeds both of
        # v7x's TensorCores; for small n just take the exact batch.
        tile_n = _round_up(pl.cdiv(n, 2), 128) if n > 256 else n
    else:
        # Multi-tile: lane-dense (1, tile_n) blocks need a multiple of 128.
        tile_n = max(128, (tile_n // 128) * 128)
    num_tiles = pl.cdiv(n, tile_n)

    kernel = functools.partial(_focal_loss_kernel, gamma=float(gamma))
    per_sample = pl.pallas_call(
        kernel,
        out_shape=jax.ShapeDtypeStruct((1, n), jnp.float32),
        grid=(num_tiles,),
        in_specs=[
            pl.BlockSpec((tile_n, c), lambda i: (i, 0)),     # logits, native dtype
            pl.BlockSpec((1, tile_n), lambda i: (0, i)),     # targets, lane-dense
        ],
        out_specs=pl.BlockSpec((1, tile_n), lambda i: (0, i)),  # loss, lane-dense
        compiler_params=pltpu.CompilerParams(
            dimension_semantics=("parallel",),               # v7x: split batch on 2 TCs
            vmem_limit_bytes=_VMEM_LIMIT_BYTES,
        ),
    )(logits, targets_row)

    loss = per_sample.reshape(-1)
    if reduction:
        loss = jnp.mean(loss)  # glue-level reduction, matches torch .mean()
    return loss


def _reference_focal_loss(logits, targets, gamma=1.0, reduction=False):
    logp = jax.nn.log_softmax(logits.astype(jnp.float32), axis=1)
    target_logp = jnp.take_along_axis(
        logp, targets.astype(jnp.int32).reshape(-1, 1), axis=1
    ).reshape(-1)
    target_p = jnp.exp(target_logp)
    weight = (1.0 - target_p) ** gamma
    loss = -weight * target_logp
    if reduction:
        loss = jnp.mean(loss)
    return loss


if __name__ == "__main__":
    key = jax.random.PRNGKey(0)
    k_logits, k_targets = jax.random.split(key)

    # Small demo consistent with the module: batch of 8, 32 classes.
    N, C = 8, 32
    logits = jax.random.normal(k_logits, (N, C), dtype=jnp.float32)
    targets = jax.random.randint(k_targets, (N,), 0, C, dtype=jnp.int32)

    loss = jax.block_until_ready(focal_loss(logits, targets, gamma=1.0, reduction=False))
    loss_mean = jax.block_until_ready(focal_loss(logits, targets, gamma=1.0, reduction=True))
    loss_g05 = jax.block_until_ready(focal_loss(logits, targets, gamma=0.5, reduction=False))

    ref = _reference_focal_loss(logits, targets, gamma=1.0)
    ref_g05 = _reference_focal_loss(logits, targets, gamma=0.5)
    assert loss.shape == (N,)
    assert jnp.allclose(loss, ref, atol=1e-5, rtol=1e-5)
    assert jnp.allclose(loss_mean, jnp.mean(ref), atol=1e-5, rtol=1e-5)
    assert jnp.allclose(loss_g05, ref_g05, atol=1e-5, rtol=1e-5)

    # Multi-tile grid with a ragged last tile (no wrapper-side padding), native
    # bf16 DMA, lane-dense targets/loss blocks, and the gamma=2 specialization.
    N2, C2 = 300, 40
    logits2 = jax.random.normal(k_logits, (N2, C2), dtype=jnp.bfloat16)
    targets2 = jax.random.randint(k_targets, (N2,), 0, C2, dtype=jnp.int32)
    loss2 = jax.block_until_ready(
        focal_loss(logits2, targets2, gamma=2.0, reduction=False, tile_n=128)
    )
    ref2 = _reference_focal_loss(logits2, targets2, gamma=2.0)
    assert loss2.shape == (N2,)
    assert jnp.allclose(loss2, ref2, atol=1e-4, rtol=1e-4)

    print("KERNEL_OK")
</pallas_src>

<mosaic_0001>
module attributes {stable_mosaic.version = 11 : i64} {
  func.func @_focal_loss_kernel(%arg0: i32, %arg1: memref<8x32xf32, #tpu.memory_space<vmem>>, %arg2: memref<1x8xi32, #tpu.memory_space<vmem>>, %arg3: memref<1x8xf32, #tpu.memory_space<vmem>>) attributes {dimension_semantics = [#tpu.dimension_semantics<parallel>], iteration_bounds = array<i64: 1>, scalar_prefetch = 0 : i64, scratch_operands = 0 : i64, tpu.core_type = #tpu.core_type<tc>, window_params = [{transform_indices = @transform_0, window_bounds = array<i64: 8, 32>}, {transform_indices = @transform_1, window_bounds = array<i64: 1, 8>}, {transform_indices = @transform_2, window_bounds = array<i64: 1, 8>}]} {
    %c0 = arith.constant 0 : index
    %c0_0 = arith.constant 0 : index
    %0 = vector.load %arg1[%c0, %c0_0] : memref<8x32xf32, #tpu.memory_space<vmem>>, vector<8x32xf32>
    %1 = tpu.transpose %0, [1, 0] : vector<8x32xf32> -> vector<32x8xf32>
    %c0_1 = arith.constant 0 : index
    %c0_2 = arith.constant 0 : index
    %2 = vector.load %arg2[%c0_1, %c0_2] : memref<1x8xi32, #tpu.memory_space<vmem>>, vector<1x8xi32>
    %3 = tpu.iota {dimensions = array<i32: 0>} : vector<32x8xi32>
    %4 = vector.broadcast %2 : vector<1x8xi32> to vector<32x8xi32>
    %5 = arith.cmpi eq, %3, %4 : vector<32x8xi32>
    %cst = arith.constant 0.000000e+00 : f32
    %6 = vector.broadcast %cst : f32 to vector<32x8xf32>
    %7 = arith.select %5, %1, %6 : vector<32x8xi1>, vector<32x8xf32>
    %cst_3 = arith.constant dense<0.000000e+00> : vector<8xf32>
    %8 = vector.multi_reduction <add>, %7, %cst_3 [0] : vector<32x8xf32> to vector<8xf32>
    %9 = vector.shape_cast %8 : vector<8xf32> to vector<1x8xf32>
    %cst_4 = arith.constant dense<0xFF800000> : vector<8xf32>
    %10 = vector.multi_reduction <maximumf>, %1, %cst_4 [0] : vector<32x8xf32> to vector<8xf32>
    %11 = vector.shape_cast %10 : vector<8xf32> to vector<1x8xf32>
    %12 = vector.broadcast %11 : vector<1x8xf32> to vector<32x8xf32>
    %13 = arith.subf %1, %12 : vector<32x8xf32>
    %14 = math.exp %13 : vector<32x8xf32>
    %cst_5 = arith.constant dense<0.000000e+00> : vector<8xf32>
    %15 = vector.multi_reduction <add>, %14, %cst_5 [0] : vector<32x8xf32> to vector<8xf32>
    %16 = vector.shape_cast %15 : vector<8xf32> to vector<1x8xf32>
    %17 = arith.subf %9, %11 : vector<1x8xf32>
    %18 = math.log %16 : vector<1x8xf32>
    %19 = arith.subf %17, %18 : vector<1x8xf32>
    %20 = math.exp %19 : vector<1x8xf32>
    %cst_6 = arith.constant 1.000000e+00 : f32
    %21 = vector.broadcast %cst_6 : f32 to vector<1x8xf32>
    %22 = arith.subf %21, %20 : vector<1x8xf32>
    %cst_7 = arith.constant 0.000000e+00 : f32
    %23 = vector.broadcast %cst_7 : f32 to vector<1x8xf32>
    %24 = arith.maximumf %22, %23 : vector<1x8xf32>
    %cst_8 = arith.constant 0.000000e+00 : f32
    %25 = vector.broadcast %cst_8 : f32 to vector<1x8xf32>
    %26 = arith.subf %25, %24 : vector<1x8xf32>
    %27 = arith.mulf %26, %19 : vector<1x8xf32>
    %c0_9 = arith.constant 0 : index
    %c0_10 = arith.constant 0 : index
    %28 = vector.load %arg3[%c0_9, %c0_10] : memref<1x8xf32, #tpu.memory_space<vmem>>, vector<1x8xf32>
    tpu.vector_store %arg3[%c0_9, %c0_10], %27 {strides = array<i32>} : memref<1x8xf32, #tpu.memory_space<vmem>>, vector<1x8xf32>,
    return
  }
  func.func @transform_0(%arg0: i32) -> (i32, i32) {
    %c0_i32 = arith.constant 0 : i32
    %c0_i32_0 = arith.constant 0 : i32
    return %arg0, %c0_i32 : i32, i32
  }
  func.func @transform_1(%arg0: i32) -> (i32, i32) {
    %c0_i32 = arith.constant 0 : i32
    %c0_i32_0 = arith.constant 0 : i32
    return %c0_i32, %arg0 : i32, i32
  }
  func.func @transform_2(%arg0: i32) -> (i32, i32) {
    %c0_i32 = arith.constant 0 : i32
    %c0_i32_0 = arith.constant 0 : i32
    return %c0_i32, %arg0 : i32, i32
  }
}

</mosaic_0001>

<llo_original>
// kernel: tpu_custom_call.1
$region0: #{tpu_custom_call.1}
  #allocation0 [shape = 'u32[]', space=smem, size = 0x4, offset = 0x4, fixed_abs, tag = 'smem constant byte address 0x4 - core index']
  #allocation1 [shape = 'u32[144,128]{1,0:T(1,128)}', space=vmem, size = 0x12000, scoped, tag = 'internal scratch']
  %s0 = inlined_call_operand.hbm [shape: f32[8,32], index: 0, kind: input, shape index: {}]
  %s1 = inlined_call_operand.vmem [shape: s32[1,8], index: 1, kind: input, shape index: {}]
  %s2 = inlined_call_operand.hbm [shape: f32[1,8], index: 2, kind: output, shape index: {}]
  %s3 = sld [smem:[#allocation0]]
  $region22: #{tpu_custom_call.1} parent=0
    _
  %s5 = ssub.s32 1, %s3
  %s6 = scalar_select 0, %s5, %s3
  $region1: #{tpu_custom_call.1} parent=0
    #allocation2 [shape = 'u8[4096]{0}', space=vmem, size = 0x1000, scoped, tag = 'input window, operand 0, single buffered']
    #allocation3 [shape = 's32[1]{0}', space=sflag, size = 0x4, scoped, tag = 'scoped memory for tpu_custom_call.1']
    #allocation4 [shape = 's32[1]{0}', space=sflag, size = 0x4, scoped, tag = 'scoped memory for tpu_custom_call.1']
    #allocation5 [shape = 'u8[512]{0}', space=vmem, size = 0x400, scoped, tag = 'output window, operand 0, single buffered']
    %7 = vsyncpa [#allocation3], 0
    %8 = vsyncpa [#allocation4], 0
    // Predicated region
    $region2: #{tpu_custom_call.1} parent=1 // pred_check
      _
    $region3: #{tpu_custom_call.1} parent=1 // pred_check_branch
      %10 = sbr.rel (0) target = $region5
    $region4: #{tpu_custom_call.1} parent=1 // pred_region
      %s12 = ssub.s32 128, 128
      %13 = vsyncadd [#allocation3], %s12
      %s15 = sshll.u32 [#allocation2], 4
      %s16 = int_to_ptr.vmem [resolvable:$true] %s15
      %18 = dma.hbm_to_vmem [thread:$0]  %s0, 128, %s16, [#allocation3]
    $region5: #{tpu_custom_call.1} parent=1 // pred_fallthru
      _
    // Predicated region
    $region6: #{tpu_custom_call.1} parent=1 // pred_check
      _
    $region7: #{tpu_custom_call.1} parent=1 // pred_check_branch
      %20 = sbr.rel (0) target = $region9
    $region8: #{tpu_custom_call.1} parent=1 // pred_region
      _
    $region9: #{tpu_custom_call.1} parent=1 // pred_fallthru
      _
    // Predicated region
    $region10: #{tpu_custom_call.1} parent=1 // pred_check
      _
    $region11: #{tpu_custom_call.1} parent=1 // pred_check_branch
      %22 = sbr.rel (0) target = $region13
    $region12: #{tpu_custom_call.1} parent=1 // pred_region
      %23 = dma.done [#allocation3], 128
    $region13: #{tpu_custom_call.1} parent=1 // pred_fallthru
      _
    %v24 = vld [vmem:[#allocation2] sm:$0xff]
    %25 = vxpose.xlu0.b32.start [1/16] %v24, 128
    %26 = vxpose.xlu0.b32.cont [2/16] 0.0, 128
    %27 = vxpose.xlu0.b32.cont [3/16] 0.0, 128
    %28 = vxpose.xlu0.b32.cont [4/16] 0.0, 128
    %29 = vxpose.xlu0.b32.cont [5/16] 0.0, 128
    %30 = vxpose.xlu0.b32.cont [6/16] 0.0, 128
    %31 = vxpose.xlu0.b32.cont [7/16] 0.0, 128
    %32 = vxpose.xlu0.b32.cont [8/16] 0.0, 128
    %33 = vxpose.xlu0.b32.cont [9/16] 0.0, 128
    %34 = vxpose.xlu0.b32.cont [10/16] 0.0, 128
    %35 = vxpose.xlu0.b32.cont [11/16] 0.0, 128
    %36 = vxpose.xlu0.b32.cont [12/16] 0.0, 128
    %37 = vxpose.xlu0.b32.cont [13/16] 0.0, 128
    %38 = vxpose.xlu0.b32.cont [14/16] 0.0, 128
    %39 = vxpose.xlu0.b32.cont [15/16] 0.0, 128
    %40 = vxpose.xlu0.b32.end [16/16] 0.0, 128
    %v41 = vpop.trf.xlu0
    %v42 = vpop.trf.xlu0
    %v43 = vpop.trf.xlu0
    %v44 = vpop.trf.xlu0
    %v45 = vpop.trf.xlu0
    %v46 = vpop.trf.xlu0
    %v47 = vpop.trf.xlu0
    %v48 = vpop.trf.xlu0
    %v49 = vpop.trf.xlu0
    %v50 = vpop.trf.xlu0
    %v51 = vpop.trf.xlu0
    %v52 = vpop.trf.xlu0
    %v53 = vpop.trf.xlu0
    %v54 = vpop.trf.xlu0
    %v55 = vpop.trf.xlu0
    %v56 = vpop.trf.xlu0
    %v57 = vld [vmem:[%s1] sm:$0x1]
    %v58 = vlaneseq
    %v59 = vshrl.u32 %v58, 7
    %v60 = vadd.s32 %v59, 8
    %v61 = vadd.s32 %v59, 16
    %v62 = vadd.s32 %v59, 24
    %v63 = vlaneseq
    %v64 = vshrl.u32 %v63, 7
    %v65 = vsub.s32 0, %v64
    %v66 = vrot.slane %v57, %v65
    %vm67 = vcmp.eq.s32.totalorder %v59, %v66
    %vm68 = vcmp.eq.s32.totalorder %v60, %v66
    %vm69 = vcmp.eq.s32.totalorder %v61, %v66
    %vm70 = vcmp.eq.s32.totalorder %v62, %v66
    %v71 = vsel %vm67, %v41, 0.0
    %v72 = vsel %vm68, %v42, 0.0
    %v73 = vsel %vm69, %v43, 0.0
    %v74 = vsel %vm70, %v44, 0.0
    %vm75 = vcmask 64512
    %v76 = vsel %vm75, %v71, 0.0
    %v77 = vsel %vm75, %v72, 0.0
    %v78 = vadd.f32 %v76, %v77
    %v79 = vsel %vm75, %v73, 0.0
    %v80 = vadd.f32 %v78, %v79
    %v81 = vsel %vm75, %v74, 0.0
    %v82 = vadd.f32 %v80, %v81
    %v83 = vrot.slane %v82, 4
    %v84 = vadd.f32 %v82, %v83
    %v85 = vrot.slane %v84, 2
    %v86 = vadd.f32 %v84, %v85
    %v87 = vrot.slane %v86, 1
    %v88 = vadd.f32 %v86, %v87
    %v89 = vsel %vm75, %v41, -inf
    %v90 = vsel %vm75, %v42, -inf
    %v91 = vsel %vm75, %v43, -inf
    %v92 = vsel %vm75, %v44, -inf
    %v93 = vmax.f32 %v89, %v90
    %v94 = vmax.f32 %v91, %v92
    %v95 = vmax.f32 %v93, %v94
    %v96 = vrot.slane %v95, 4
    %v97 = vmax.f32 %v95, %v96
    %v98 = vrot.slane %v97, 2
    %v99 = vmax.f32 %v97, %v98
    %v100 = vrot.slane %v99, 1
    %v101 = vmax.f32 %v99, %v100
    %v102 = vsub.f32 %v41, %v101
    %v103 = vsub.f32 %v42, %v101
    %v104 = vsub.f32 %v43, %v101
    %v105 = vsub.f32 %v44, %v101
    %v106 = vmul.f32 %v102, 1.442695
    %v107 = vpow.pop %v106
    %v108 = vmul.f32 %v103, 1.442695
    %v109 = vpow.pop %v108
    %v110 = vmul.f32 %v104, 1.442695
    %v111 = vpow.pop %v110
    %v112 = vmul.f32 %v105, 1.442695
    %v113 = vpow.pop %v112
    %v114 = vsel %vm75, %v107, 0.0
    %v115 = vsel %vm75, %v109, 0.0
    %v116 = vadd.f32 %v114, %v115
    %v117 = vsel %vm75, %v111, 0.0
    %v118 = vadd.f32 %v116, %v117
    %v119 = vsel %vm75, %v113, 0.0
    %v120 = vadd.f32 %v118, %v119
    %v121 = vrot.slane %v120, 4
    %v122 = vadd.f32 %v120, %v121
    %v123 = vrot.slane %v122, 2
    %v124 = vadd.f32 %v122, %v123
    %v125 = vrot.slane %v124, 1
    %v126 = vadd.f32 %v124, %v125
    %v127 = vsub.f32 %v88, %v101
    %v128 = vlog2.pop %v126
    %v129 = vmul.f32 %v128, 0.6931472
    %v130 = vsub.f32 %v127, %v129
    %v131 = vmul.f32 %v130, 1.442695
    %v132 = vpow.pop %v131
    %v133 = vsub.f32 1.0, %v132
    %v134 = vmax.f32 %v133, 0.0
    %v135 = vsub.f32 0.0, %v134
    %v136 = vmul.f32 %v135, %v130
    %vm137 = vcmask 57344
    %138 = vst.msk [vmem:[#allocation5] sm:$0x1] %vm137, %v136
    // Predicated region
    $region14: #{tpu_custom_call.1} parent=1 // pred_check
      _
    $region15: #{tpu_custom_call.1} parent=1 // pred_check_branch
      %140 = sbr.rel (0) target = $region17
    $region16: #{tpu_custom_call.1} parent=1 // pred_region
      %s142 = ssub.s32 16, 16
      %143 = vsyncadd [#allocation4], %s142
      %s145 = sshll.u32 [#allocation5], 4
      %s146 = int_to_ptr.vmem [resolvable:$true] %s145
      %148 = dma.vmem_to_hbm [thread:$0]  %s146, 16, %s2, [#allocation4]
    $region17: #{tpu_custom_call.1} parent=1 // pred_fallthru
      _
    // Predicated region
    $region18: #{tpu_custom_call.1} parent=1 // pred_check
      _
    $region19: #{tpu_custom_call.1} parent=1 // pred_check_branch
      %150 = sbr.rel (0) target = $region21
    $region20: #{tpu_custom_call.1} parent=1 // pred_region
      %151 = dma.done [#allocation4], 16
    $region21: #{tpu_custom_call.1} parent=1 // pred_fallthru
      _
    %152 = vsyncpa [#allocation3], 1
    %153 = vsyncpa [#allocation4], 1

</llo_original>
